<compile_context>
chip_gen: v7x
topology: tpu7x:2x2x1
jax: 0.10.0
libtpu: 0.0.40
codegen_flags: <defaults>
</compile_context>

<pallas_src>
import functools

import jax
import jax.numpy as jnp
from jax.experimental import pallas as pl
from jax.experimental.pallas import tpu as pltpu

# torch module picks shift_direction = ±1 at random in __init__;
# we fix it deterministically (override via the `shift` kwarg to match an
# actual module instance).
SHIFT_DIRECTION = 1


def _kernel(x_ref, w_ref, o_ref, *, width, shift, block_batch, compute_dtype):
    # x_ref: (BB, 2, Cin, P), w_ref: (3, Cout, Cin), o_ref: (BB, Cout, P); P=H*W
    p = x_ref.shape[3]
    cdt = compute_dtype

    # Weight taps stay resident across the batch loop (a few vregs each).
    w_hm1 = w_ref[0].astype(cdt)          # tap k=0 -> input row h-1
    w_h = w_ref[1].astype(cdt)            # tap k=1 -> input row h
    w_hp1 = w_ref[2].astype(cdt)          # tap k=2 -> input row h+1

    # (1, P) constants, broadcast over the Cout sublane axis inside `where`.
    pos = jax.lax.broadcasted_iota(jnp.int32, (1, p), 1)
    keep_hm1 = pos >= width               # zero the top image row of the h-1 tap
    keep_hp1 = pos < (p - width)          # zero the bottom image row of the h+1 tap

    s = shift % width                     # static python int
    if s != 0:
        w_idx = pos % width

    shift_fwd = width % p                 # brings row h-1 under row h
    shift_bwd = (p - width) % p           # brings row h+1 under row h
    wrap_fix = (p - width) % p            # extra roll for the circular W wrap

    def body(b, carry):
        xb = x_ref[b]                                            # (2, Cin, P)
        # t_2: sum over the group-of-2 channel axis.
        x2 = xb[0].astype(jnp.float32) + xb[1].astype(jnp.float32)
        x2 = x2.astype(cdt)                                      # (Cin, P)

        # einsum('mjknl,ijk->minl'): three K=Cin MXU matmuls; the unfold
        # taps are realized by rolling/masking the (Cout, P) OUTPUTS.
        y_h = jnp.dot(w_h, x2, preferred_element_type=jnp.float32)
        y_hm1 = jnp.dot(w_hm1, x2, preferred_element_type=jnp.float32)
        y_hp1 = jnp.dot(w_hp1, x2, preferred_element_type=jnp.float32)

        r_fwd = pltpu.roll(y_hm1, shift_fwd, axis=1) if shift_fwd else y_hm1
        r_bwd = pltpu.roll(y_hp1, shift_bwd, axis=1) if shift_bwd else y_hp1
        acc = (y_h
               + jnp.where(keep_hm1, r_fwd, 0.0)
               + jnp.where(keep_hp1, r_bwd, 0.0))                # (Cout, P)

        # torch.roll(t_5, shift, dim=3): circular shift within each W-row.
        if s == 0:
            out = acc
        else:
            rolled = pltpu.roll(acc, s, axis=1)                  # acc[(i - s) % P]
            wrap = pltpu.roll(rolled, wrap_fix, axis=1) if wrap_fix else rolled
            out = jnp.where(w_idx < s, wrap, rolled)

        o_ref[b] = out.astype(o_ref.dtype)
        return carry

    jax.lax.fori_loop(0, block_batch, body, None, unroll=2)


def _vmem_capacity_bytes():
    try:
        return int(pltpu.get_tpu_info().vmem_capacity_bytes)
    except Exception:
        return 64 * 1024 * 1024          # conservative (v7x-sized) fallback


def _pick_block_batch(batch, per_image_bytes, vmem_cap):
    """Images per grid step: big enough to amortize per-step overhead (~0.35us),
    small enough that the double-buffered blocks fit comfortably in VMEM,
    preferring an even step count >= 2 so v7x can split across both cores."""
    budget = int(vmem_cap * 0.6)         # leave headroom for weights/scratch
    cands = [bb for bb in (16, 8, 4, 2, 1)
             if batch % bb == 0 and 2 * bb * per_image_bytes <= budget]
    if not cands:
        return 1
    for bb in cands:                     # even number of steps (megacore split)
        n = batch // bb
        if n >= 2 and n % 2 == 0:
            return bb
    for bb in cands:                     # at least 2 steps
        if batch // bb >= 2:
            return bb
    return cands[0]


def kernel_generated_0_forward(x, weight, *, shift=SHIFT_DIRECTION,
                               block_batch=None, mxu_dtype=None):
    """x: (B, 2*Cin, H, W) NCHW; weight: (Cout, Cin, 3). Returns (B, Cout, H, W)."""
    B, C2, H, W = x.shape
    Cin = C2 // 2
    Cout = weight.shape[0]
    P = H * W

    out_dtype = x.dtype
    if mxu_dtype is None:
        # bf16 inputs get bf16 MXU operands (f32 accumulation); f32 stays f32
        # so results match the torch reference to tight tolerance.
        mxu_dtype = jnp.bfloat16 if x.dtype == jnp.bfloat16 else jnp.float32

    # Glue: split channel groups, flatten HW (no dtype change -> HBM-bound
    # read stream keeps the caller's precision); tap-major weight.
    x_r = x.reshape(B, 2, Cin, P)
    w_3 = jnp.transpose(weight, (2, 0, 1))                       # (3, Cout, Cin)

    per_image = (2 * Cin * P * x_r.dtype.itemsize
                 + Cout * P * jnp.dtype(out_dtype).itemsize)
    cap = _vmem_capacity_bytes()
    if block_batch is None:
        block_batch = _pick_block_batch(B, per_image, cap)
    assert B % block_batch == 0, (B, block_batch)
    nsteps = B // block_batch

    need = (2 * block_batch * per_image
            + 2 * 3 * Cout * Cin * w_3.dtype.itemsize
            + (6 << 20))                                         # body intermediates
    vmem_limit = int(min(max(need, 32 << 20), cap * 3 // 4))

    out = pl.pallas_call(
        functools.partial(_kernel, width=W, shift=shift,
                          block_batch=block_batch, compute_dtype=mxu_dtype),
        out_shape=jax.ShapeDtypeStruct((B, Cout, P), out_dtype),
        grid=(nsteps,),
        in_specs=[
            pl.BlockSpec((block_batch, 2, Cin, P), lambda g: (g, 0, 0, 0)),
            pl.BlockSpec((3, Cout, Cin), lambda g: (0, 0, 0)),
        ],
        out_specs=pl.BlockSpec((block_batch, Cout, P), lambda g: (g, 0, 0)),
        compiler_params=pltpu.CompilerParams(
            dimension_semantics=("parallel",),
            vmem_limit_bytes=vmem_limit,
        ),
    )(x_r, w_3)
    return out.reshape(B, Cout, H, W)


def _reference(x, weight, shift):
    """Pure-JAX mirror of the torch forward (for verification)."""
    B, C2, H, W = x.shape
    Cin = C2 // 2
    t2 = x.reshape(B, 2, Cin, H, W).sum(axis=1)                         # (B, Cin, H, W)
    pad = jnp.pad(t2, ((0, 0), (0, 0), (1, 1), (0, 0)))
    t4 = jnp.stack([pad[:, :, k:k + H, :] for k in range(3)], axis=2)   # (B, Cin, 3, H, W)
    t5 = jnp.einsum('mjknl,ijk->minl', t4, weight)                      # (B, Cout, H, W)
    return jnp.roll(t5, shift, axis=3)


if __name__ == "__main__":
    # Small shapes consistent with the module's structure:
    # original: x (128, 128, 56, 56), weight (32, 64, 3)
    # here:     x (4, 32, 8, 16),     weight (8, 16, 3)
    B, Cin, Cout, H, W = 4, 16, 8, 8, 16

    key = jax.random.PRNGKey(0)
    kx, kw = jax.random.split(key)
    x = jax.random.normal(kx, (B, 2 * Cin, H, W), jnp.float32)
    weight = jax.random.normal(kw, (Cout, Cin, 3), jnp.float32)

    # Verify both possible shift directions of the original module.
    for sh in (1, -1):
        y = jax.block_until_ready(kernel_generated_0_forward(x, weight, shift=sh))
        y_ref = _reference(x, weight, sh)
        assert y.shape == (B, Cout, H, W), y.shape
        max_err = float(jnp.max(jnp.abs(y - y_ref)))
        assert max_err < 1e-3, f"shift={sh} max abs err {max_err}"

    print("KERNEL_OK")
</pallas_src>

<mosaic_0001>
module attributes {stable_mosaic.version = 11 : i64} {
  func.func @_kernel(%arg0: i32, %arg1: memref<2x2x16x128xf32, #tpu.memory_space<vmem>>, %arg2: memref<3x8x16xf32, #tpu.memory_space<vmem>>, %arg3: memref<2x8x128xf32, #tpu.memory_space<vmem>>) attributes {dimension_semantics = [#tpu.dimension_semantics<parallel>], iteration_bounds = array<i64: 2>, scalar_prefetch = 0 : i64, scratch_operands = 0 : i64, tpu.core_type = #tpu.core_type<tc>, window_params = [{transform_indices = @transform_0, window_bounds = array<i64: 2, 2, 16, 128>}, {pipeline_mode = #tpu.pipeline_mode<synchronous>, transform_indices = @transform_1, window_bounds = array<i64: 3, 8, 16>}, {transform_indices = @transform_2, window_bounds = array<i64: 2, 8, 128>}]} {
    %c0 = arith.constant 0 : index
    %c0_0 = arith.constant 0 : index
    %c0_1 = arith.constant 0 : index
    %0 = vector.load %arg2[%c0, %c0_0, %c0_1] : memref<3x8x16xf32, #tpu.memory_space<vmem>>, vector<1x8x16xf32>
    %1 = vector.shape_cast %0 : vector<1x8x16xf32> to vector<8x16xf32>
    %c1 = arith.constant 1 : index
    %c0_2 = arith.constant 0 : index
    %c0_3 = arith.constant 0 : index
    %2 = vector.load %arg2[%c1, %c0_2, %c0_3] : memref<3x8x16xf32, #tpu.memory_space<vmem>>, vector<1x8x16xf32>
    %3 = vector.shape_cast %2 : vector<1x8x16xf32> to vector<8x16xf32>
    %c2 = arith.constant 2 : index
    %c0_4 = arith.constant 0 : index
    %c0_5 = arith.constant 0 : index
    %4 = vector.load %arg2[%c2, %c0_4, %c0_5] : memref<3x8x16xf32, #tpu.memory_space<vmem>>, vector<1x8x16xf32>
    %5 = vector.shape_cast %4 : vector<1x8x16xf32> to vector<8x16xf32>
    %6 = tpu.iota {dimensions = array<i32: 1>} : vector<1x128xi32>
    %c16_i32 = arith.constant 16 : i32
    %7 = vector.broadcast %c16_i32 : i32 to vector<1x128xi32>
    %8 = arith.cmpi sge, %6, %7 : vector<1x128xi32>
    %c112_i32 = arith.constant 112 : i32
    %9 = vector.broadcast %c112_i32 : i32 to vector<1x128xi32>
    %10 = arith.cmpi slt, %6, %9 : vector<1x128xi32>
    %c16_i32_6 = arith.constant 16 : i32
    %c0_i32 = arith.constant 0 : i32
    %11 = arith.cmpi eq, %c16_i32_6, %c0_i32 : i32
    %c1_i32 = arith.constant 1 : i32
    %12 = arith.select %11, %c1_i32, %c16_i32_6 : i32
    %13 = vector.broadcast %12 : i32 to vector<1x128xi32>
    %14 = arith.remsi %6, %13 : vector<1x128xi32>
    %c0_i32_7 = arith.constant 0 : i32
    %15 = vector.broadcast %c0_i32_7 : i32 to vector<1x128xi32>
    %16 = arith.cmpi ne, %14, %15 : vector<1x128xi32>
    %c0_i32_8 = arith.constant 0 : i32
    %17 = vector.broadcast %c0_i32_8 : i32 to vector<1x128xi32>
    %18 = arith.cmpi slt, %14, %17 : vector<1x128xi32>
    %c0_i32_9 = arith.constant 0 : i32
    %19 = arith.cmpi slt, %12, %c0_i32_9 : i32
    %20 = vector.broadcast %19 : i1 to vector<1x128xi1>
    %21 = vector.broadcast %20 : vector<1x128xi1> to vector<1x128xi1>
    %22 = arith.xori %18, %21 : vector<1x128xi1>
    %23 = arith.andi %22, %16 : vector<1x128xi1>
    %24 = vector.broadcast %12 : i32 to vector<1x128xi32>
    %25 = arith.addi %14, %24 : vector<1x128xi32>
    %26 = arith.select %23, %25, %14 : vector<1x128xi1>, vector<1x128xi32>
    %c0_i32_10 = arith.constant 0 : i32
    %27 = arith.index_cast %c0_i32_10 : i32 to index
    %c0_11 = arith.constant 0 : index
    %c0_12 = arith.constant 0 : index
    %c0_13 = arith.constant 0 : index
    %28 = vector.load %arg1[%27, %c0_11, %c0_12, %c0_13] : memref<2x2x16x128xf32, #tpu.memory_space<vmem>>, vector<1x2x16x128xf32>
    %29 = vector.shape_cast %28 : vector<1x2x16x128xf32> to vector<2x16x128xf32>
    %30 = vector.extract_strided_slice %29 {offsets = [0, 0, 0], sizes = [1, 16, 128], strides = [1, 1, 1]} : vector<2x16x128xf32> to vector<1x16x128xf32>
    %31 = vector.shape_cast %30 : vector<1x16x128xf32> to vector<16x128xf32>
    %32 = vector.extract_strided_slice %29 {offsets = [1, 0, 0], sizes = [1, 16, 128], strides = [1, 1, 1]} : vector<2x16x128xf32> to vector<1x16x128xf32>
    %33 = vector.shape_cast %32 : vector<1x16x128xf32> to vector<16x128xf32>
    %34 = arith.addf %31, %33 : vector<16x128xf32>
    %cst = arith.constant dense<0.000000e+00> : vector<8x128xf32>
    %35 = tpu.matmul %3, %34, %cst {dimension_numbers = #tpu.dot_dimension_numbers<[1], [0], [0], [1], [0, 0, 1, 1], [], []>} : vector<8x16xf32>, vector<16x128xf32>, vector<8x128xf32> -> vector<8x128xf32>
    %cst_14 = arith.constant dense<0.000000e+00> : vector<8x128xf32>
    %36 = tpu.matmul %1, %34, %cst_14 {dimension_numbers = #tpu.dot_dimension_numbers<[1], [0], [0], [1], [0, 0, 1, 1], [], []>} : vector<8x16xf32>, vector<16x128xf32>, vector<8x128xf32> -> vector<8x128xf32>
    %cst_15 = arith.constant dense<0.000000e+00> : vector<8x128xf32>
    %37 = tpu.matmul %5, %34, %cst_15 {dimension_numbers = #tpu.dot_dimension_numbers<[1], [0], [0], [1], [0, 0, 1, 1], [], []>} : vector<8x16xf32>, vector<16x128xf32>, vector<8x128xf32> -> vector<8x128xf32>
    %c16_i32_16 = arith.constant 16 : i32
    %38 = tpu.dynamic_rotate %36 by %c16_i32_16 dim 1 : vector<8x128xf32>, i32 -> vector<8x128xf32>
    %c112_i32_17 = arith.constant 112 : i32
    %39 = tpu.dynamic_rotate %37 by %c112_i32_17 dim 1 : vector<8x128xf32>, i32 -> vector<8x128xf32>
    %cst_18 = arith.constant 0.000000e+00 : f32
    %40 = vector.shape_cast %8 : vector<1x128xi1> to vector<1x128xi1>
    %41 = vector.broadcast %40 : vector<1x128xi1> to vector<8x128xi1>
    %42 = vector.broadcast %cst_18 : f32 to vector<8x128xf32>
    %43 = arith.select %41, %38, %42 : vector<8x128xi1>, vector<8x128xf32>
    %44 = arith.addf %35, %43 : vector<8x128xf32>
    %cst_19 = arith.constant 0.000000e+00 : f32
    %45 = vector.shape_cast %10 : vector<1x128xi1> to vector<1x128xi1>
    %46 = vector.broadcast %45 : vector<1x128xi1> to vector<8x128xi1>
    %47 = vector.broadcast %cst_19 : f32 to vector<8x128xf32>
    %48 = arith.select %46, %39, %47 : vector<8x128xi1>, vector<8x128xf32>
    %49 = arith.addf %44, %48 : vector<8x128xf32>
    %c1_i32_20 = arith.constant 1 : i32
    %50 = tpu.dynamic_rotate %49 by %c1_i32_20 dim 1 : vector<8x128xf32>, i32 -> vector<8x128xf32>
    %c112_i32_21 = arith.constant 112 : i32
    %51 = tpu.dynamic_rotate %50 by %c112_i32_21 dim 1 : vector<8x128xf32>, i32 -> vector<8x128xf32>
    %c1_i32_22 = arith.constant 1 : i32
    %52 = vector.broadcast %c1_i32_22 : i32 to vector<1x128xi32>
    %53 = arith.cmpi slt, %26, %52 : vector<1x128xi32>
    %54 = vector.shape_cast %53 : vector<1x128xi1> to vector<1x128xi1>
    %55 = vector.broadcast %54 : vector<1x128xi1> to vector<8x128xi1>
    %56 = arith.select %55, %51, %50 : vector<8x128xi1>, vector<8x128xf32>
    %57 = arith.index_cast %c0_i32_10 : i32 to index
    %c0_23 = arith.constant 0 : index
    %c0_24 = arith.constant 0 : index
    %58 = vector.load %arg3[%57, %c0_23, %c0_24] : memref<2x8x128xf32, #tpu.memory_space<vmem>>, vector<1x8x128xf32>
    %59 = vector.shape_cast %58 : vector<1x8x128xf32> to vector<8x128xf32>
    %60 = vector.shape_cast %56 : vector<8x128xf32> to vector<1x8x128xf32>
    tpu.vector_store %arg3[%57, %c0_23, %c0_24], %60 {strides = array<i32>} : memref<2x8x128xf32, #tpu.memory_space<vmem>>, vector<1x8x128xf32>,
    %c1_i32_25 = arith.constant 1 : i32
    %61 = arith.index_cast %c1_i32_25 : i32 to index
    %c0_26 = arith.constant 0 : index
    %c0_27 = arith.constant 0 : index
    %c0_28 = arith.constant 0 : index
    %62 = vector.load %arg1[%61, %c0_26, %c0_27, %c0_28] : memref<2x2x16x128xf32, #tpu.memory_space<vmem>>, vector<1x2x16x128xf32>
    %63 = vector.shape_cast %62 : vector<1x2x16x128xf32> to vector<2x16x128xf32>
    %64 = vector.extract_strided_slice %63 {offsets = [0, 0, 0], sizes = [1, 16, 128], strides = [1, 1, 1]} : vector<2x16x128xf32> to vector<1x16x128xf32>
    %65 = vector.shape_cast %64 : vector<1x16x128xf32> to vector<16x128xf32>
    %66 = vector.extract_strided_slice %63 {offsets = [1, 0, 0], sizes = [1, 16, 128], strides = [1, 1, 1]} : vector<2x16x128xf32> to vector<1x16x128xf32>
    %67 = vector.shape_cast %66 : vector<1x16x128xf32> to vector<16x128xf32>
    %68 = arith.addf %65, %67 : vector<16x128xf32>
    %cst_29 = arith.constant dense<0.000000e+00> : vector<8x128xf32>
    %69 = tpu.matmul %3, %68, %cst_29 {dimension_numbers = #tpu.dot_dimension_numbers<[1], [0], [0], [1], [0, 0, 1, 1], [], []>} : vector<8x16xf32>, vector<16x128xf32>, vector<8x128xf32> -> vector<8x128xf32>
    %cst_30 = arith.constant dense<0.000000e+00> : vector<8x128xf32>
    %70 = tpu.matmul %1, %68, %cst_30 {dimension_numbers = #tpu.dot_dimension_numbers<[1], [0], [0], [1], [0, 0, 1, 1], [], []>} : vector<8x16xf32>, vector<16x128xf32>, vector<8x128xf32> -> vector<8x128xf32>
    %cst_31 = arith.constant dense<0.000000e+00> : vector<8x128xf32>
    %71 = tpu.matmul %5, %68, %cst_31 {dimension_numbers = #tpu.dot_dimension_numbers<[1], [0], [0], [1], [0, 0, 1, 1], [], []>} : vector<8x16xf32>, vector<16x128xf32>, vector<8x128xf32> -> vector<8x128xf32>
    %c16_i32_32 = arith.constant 16 : i32
    %72 = tpu.dynamic_rotate %70 by %c16_i32_32 dim 1 : vector<8x128xf32>, i32 -> vector<8x128xf32>
    %c112_i32_33 = arith.constant 112 : i32
    %73 = tpu.dynamic_rotate %71 by %c112_i32_33 dim 1 : vector<8x128xf32>, i32 -> vector<8x128xf32>
    %cst_34 = arith.constant 0.000000e+00 : f32
    %74 = vector.shape_cast %8 : vector<1x128xi1> to vector<1x128xi1>
    %75 = vector.broadcast %74 : vector<1x128xi1> to vector<8x128xi1>
    %76 = vector.broadcast %cst_34 : f32 to vector<8x128xf32>
    %77 = arith.select %75, %72, %76 : vector<8x128xi1>, vector<8x128xf32>
    %78 = arith.addf %69, %77 : vector<8x128xf32>
    %cst_35 = arith.constant 0.000000e+00 : f32
    %79 = vector.shape_cast %10 : vector<1x128xi1> to vector<1x128xi1>
    %80 = vector.broadcast %79 : vector<1x128xi1> to vector<8x128xi1>
    %81 = vector.broadcast %cst_35 : f32 to vector<8x128xf32>
    %82 = arith.select %80, %73, %81 : vector<8x128xi1>, vector<8x128xf32>
    %83 = arith.addf %78, %82 : vector<8x128xf32>
    %c1_i32_36 = arith.constant 1 : i32
    %84 = tpu.dynamic_rotate %83 by %c1_i32_36 dim 1 : vector<8x128xf32>, i32 -> vector<8x128xf32>
    %c112_i32_37 = arith.constant 112 : i32
    %85 = tpu.dynamic_rotate %84 by %c112_i32_37 dim 1 : vector<8x128xf32>, i32 -> vector<8x128xf32>
    %c1_i32_38 = arith.constant 1 : i32
    %86 = vector.broadcast %c1_i32_38 : i32 to vector<1x128xi32>
    %87 = arith.cmpi slt, %26, %86 : vector<1x128xi32>
    %88 = vector.shape_cast %87 : vector<1x128xi1> to vector<1x128xi1>
    %89 = vector.broadcast %88 : vector<1x128xi1> to vector<8x128xi1>
    %90 = arith.select %89, %85, %84 : vector<8x128xi1>, vector<8x128xf32>
    %91 = arith.index_cast %c1_i32_25 : i32 to index
    %c0_39 = arith.constant 0 : index
    %c0_40 = arith.constant 0 : index
    %92 = vector.load %arg3[%91, %c0_39, %c0_40] : memref<2x8x128xf32, #tpu.memory_space<vmem>>, vector<1x8x128xf32>
    %93 = vector.shape_cast %92 : vector<1x8x128xf32> to vector<8x128xf32>
    %94 = vector.shape_cast %90 : vector<8x128xf32> to vector<1x8x128xf32>
    tpu.vector_store %arg3[%91, %c0_39, %c0_40], %94 {strides = array<i32>} : memref<2x8x128xf32, #tpu.memory_space<vmem>>, vector<1x8x128xf32>,
    %c2_i32 = arith.constant 2 : i32
    return
  }
  func.func @transform_0(%arg0: i32) -> (i32, i32, i32, i32) {
    %c0_i32 = arith.constant 0 : i32
    %c0_i32_0 = arith.constant 0 : i32
    %c0_i32_1 = arith.constant 0 : i32
    %c0_i32_2 = arith.constant 0 : i32
    return %arg0, %c0_i32, %c0_i32_0, %c0_i32_1 : i32, i32, i32, i32
  }
  func.func @transform_1(%arg0: i32) -> (i32, i32, i32) {
    %c0_i32 = arith.constant 0 : i32
    %c0_i32_0 = arith.constant 0 : i32
    %c0_i32_1 = arith.constant 0 : i32
    %c0_i32_2 = arith.constant 0 : i32
    return %c0_i32, %c0_i32_0, %c0_i32_1 : i32, i32, i32
  }
  func.func @transform_2(%arg0: i32) -> (i32, i32, i32) {
    %c0_i32 = arith.constant 0 : i32
    %c0_i32_0 = arith.constant 0 : i32
    %c0_i32_1 = arith.constant 0 : i32
    return %arg0, %c0_i32, %c0_i32_0 : i32, i32, i32
  }
}

</mosaic_0001>

<llo_original>
// kernel: tpu_custom_call.1
$region0: #{tpu_custom_call.1}
  #allocation0 [shape = 'u32[]', space=smem, size = 0x4, offset = 0x4, fixed_abs, tag = 'smem constant byte address 0x4 - core index']
  #allocation1 [shape = 'u32[144,128]{1,0:T(1,128)}', space=vmem, size = 0x12000, scoped, tag = 'internal scratch']
  %s0 = inlined_call_operand.hbm [shape: f32[4,2,16,128], index: 0, kind: input, shape index: {}]
  %s1 = inlined_call_operand.hbm [shape: f32[3,8,16], index: 1, kind: input, shape index: {}]
  %s2 = inlined_call_operand.hbm [shape: f32[4,8,128], index: 2, kind: output, shape index: {}]
  %s3 = sld [smem:[#allocation0]]
  $region49: #{tpu_custom_call.1} parent=0
    _
  %s5 = ssub.s32 1, %s3
  %s6 = scalar_select 0, %s5, %s3
  $region1: #{tpu_custom_call.1} parent=0
    #allocation2 [shape = 'u8[65536]{0}', space=vmem, size = 0x10000, scoped, tag = 'input window, operand 0']
    #allocation3 [shape = 's32[2]{0}', space=sflag, size = 0x8, scoped, tag = 'scoped memory for tpu_custom_call.1']
    #allocation4 [shape = 's32[2]{0}', space=sflag, size = 0x8, scoped, tag = 'scoped memory for tpu_custom_call.1']
    #allocation5 [shape = 'u8[12288]{0}', space=vmem, size = 0x3000, scoped, tag = 'input window, operand 1, single buffered']
    #allocation6 [shape = 's32[1]{0}', space=sflag, size = 0x4, scoped, tag = 'scoped memory for tpu_custom_call.1']
    #allocation7 [shape = 'u8[16384]{0}', space=vmem, size = 0x4000, scoped, tag = 'output window, operand 0']
    %7 = vsyncpa [#allocation3], 0
    %s8 = scalar_lea.sflag [#allocation3], 1
    %9 = vsyncpa %s8, 0
    %10 = vsyncpa [#allocation6], 0
    %11 = vsyncpa [#allocation4], 0
    %s12 = scalar_lea.sflag [#allocation4], 1
    %13 = vsyncpa %s12, 0
    loop: start=0, step=1, limit=4
    $region2: #{tpu_custom_call.1} parent=1 // loop_pre_header
      _
    $region3: #{tpu_custom_call.1} parent=1 // loop_header
      %s15 = sphi 0, %s19
      %p16 = scmp.ge.s32.totalorder %s15, 4
      %s25 = sphi 0, %s27
      %s28 = sphi 0, %s25
      %s29 = sphi 0, %s28
      %s45 = sphi 0, %s29
      %s49 = sphi 0, %s49
      %s51 = sphi 0, %s49
      %s52 = sphi 0, %s51
      %s66 = sphi 0, %s52
      %s72 = sphi 0, %s74
      %s75 = sphi 0, %s72
      %s76 = sphi 0, %s75
      %s92 = sphi 0, %s76
    $region4: #{tpu_custom_call.1} parent=1 // loop_header_branch
      %18 = sbr.rel (%p16) target = $region8
    $region5: #{tpu_custom_call.1} parent=1 // loop_body
      %s20 = ssub.s32 %s15, 1
      %s21 = ssub.s32 %s15, 2
      %s22 = sadd.s32 %s15, 1
      %s23 = ssub.s32 %s15, %s22
      %p24 = scmp.eq.s32.totalorder %s23, 0
      %s26 = sadd.s32 %s25, 1
      %s27 = scalar_select %p24, %s25, %s26
      %p30 = pneg %p24
      %p31 = scmp.eq.s32.totalorder %s15, 1
      %p32 = por %p30, %p31
      %p33 = scmp.ne.s32.totalorder %s25, %s28
      %p34 = scmp.eq.s32.totalorder %s15, 0
      %p35 = por %p33, %p34
      %p36 = scmp.ne.s32.totalorder %s25, %s28
      %p37 = scmp.eq.s32.totalorder %s20, 1
      %p38 = por %p36, %p37
      %p39 = scmp.ne.s32.totalorder %s28, %s29
      %p40 = scmp.eq.s32.totalorder %s20, 0
      %p41 = por %p39, %p40
      %p42 = scmp.ne.s32.totalorder %s28, %s29
      %p43 = scmp.eq.s32.totalorder %s21, 1
      %p44 = por %p42, %p43
      %p46 = scmp.ne.s32.totalorder %s29, %s45
      %p47 = scmp.eq.s32.totalorder %s21, 0
      %p48 = por %p46, %p47
      %s50 = sadd.s32 %s49, 1
      %p53 = scmp.eq.s32.totalorder %s15, 1
      %p54 = scmp.ne.s32.totalorder %s49, %s51
      %p55 = scmp.eq.s32.totalorder %s15, 0
      %p56 = por %p54, %p55
      %p57 = scmp.ne.s32.totalorder %s49, %s51
      %p58 = scmp.eq.s32.totalorder %s20, 1
      %p59 = por %p57, %p58
      %p60 = scmp.ne.s32.totalorder %s51, %s52
      %p61 = scmp.eq.s32.totalorder %s20, 0
      %p62 = por %p60, %p61
      %p63 = scmp.ne.s32.totalorder %s51, %s52
      %p64 = scmp.eq.s32.totalorder %s21, 1
      %p65 = por %p63, %p64
      %p67 = scmp.ne.s32.totalorder %s52, %s66
      %p68 = scmp.eq.s32.totalorder %s21, 0
      %p69 = por %p67, %p68
      %s70 = ssub.s32 %s15, %s22
      %p71 = scmp.eq.s32.totalorder %s70, 0
      %s73 = sadd.s32 %s72, 1
      %s74 = scalar_select %p71, %s72, %s73
      %p77 = pneg %p71
      %p78 = scmp.eq.s32.totalorder %s15, 1
      %p79 = por %p77, %p78
      %p80 = scmp.ne.s32.totalorder %s72, %s75
      %p81 = scmp.eq.s32.totalorder %s15, 0
      %p82 = por %p80, %p81
      %p83 = scmp.ne.s32.totalorder %s72, %s75
      %p84 = scmp.eq.s32.totalorder %s20, 1
      %p85 = por %p83, %p84
      %p86 = scmp.ne.s32.totalorder %s75, %s76
      %p87 = scmp.eq.s32.totalorder %s20, 0
      %p88 = por %p86, %p87
      %p89 = scmp.ne.s32.totalorder %s75, %s76
      %p90 = scmp.eq.s32.totalorder %s21, 1
      %p91 = por %p89, %p90
      %p93 = scmp.ne.s32.totalorder %s76, %s92
      %p94 = scmp.eq.s32.totalorder %s21, 0
      %p95 = por %p93, %p94
      %p96 = scmp.le.s32.totalorder 1, %s15
      %p97 = scmp.lt.s32.totalorder %s15, 3
      %p98 = pnand %p96, %p97
      %p99 = pneg %p98
      // Predicated region
      $region9: #{tpu_custom_call.1} parent=5 // pred_check
        _
      $region10: #{tpu_custom_call.1} parent=5 // pred_check_branch
        %101 = sbr.rel (%p98) target = $region12
      $region11: #{tpu_custom_call.1} parent=5 // pred_region
        %s102 = ssub.s32 %s15, 1
        // Predicated region
        $region13: #{tpu_custom_call.1} parent=11 // pred_check
          %p103 = pneg %p62
        $region14: #{tpu_custom_call.1} parent=11 // pred_check_branch
          %105 = sbr.rel (%p103) target = $region16
        $region15: #{tpu_custom_call.1} parent=11 // pred_region
          %s107 = ssub.s32 384, 384
          %108 = vsyncadd [#allocation6], %s107
          %s109 = sshll.u32 [#allocation5], 4
          %s110 = int_to_ptr.vmem [resolvable:$true] %s109
          %115 = dma.hbm_to_vmem [thread:$0]  %s1, 384, %s110, [#allocation6], 128, 128, 8
        $region16: #{tpu_custom_call.1} parent=11 // pred_fallthru
          _
      $region12: #{tpu_custom_call.1} parent=5 // pred_fallthru
        _
      %p116 = scmp.lt.s32.totalorder %s15, 2
      // Predicated region
      $region17: #{tpu_custom_call.1} parent=5 // pred_check
        %p117 = pneg %p116
      $region18: #{tpu_custom_call.1} parent=5 // pred_check_branch
        %119 = sbr.rel (%p117) target = $region20
      $region19: #{tpu_custom_call.1} parent=5 // pred_region
        // Predicated region
        $region21: #{tpu_custom_call.1} parent=19 // pred_check
          %p120 = pneg %p35
        $region22: #{tpu_custom_call.1} parent=19 // pred_check_branch
          %122 = sbr.rel (%p120) target = $region24
        $region23: #{tpu_custom_call.1} parent=19 // pred_region
          %s123 = sand.u32 %s25, 1
          %s124 = scalar_lea.sflag [#allocation3], %s123
          %s125 = sand.u32 %s25, 1
          %s126 = smul.addr %s125, 64
          %s127 = scalar_lea.vmem [#allocation2], %s126
          %s128 = smul.u32 2, %s15
          %s130 = ssub.s32 1024, 1024
          %131 = vsyncadd %s124, %s130
          %s132 = smul.addr %s128, 4
          %s133 = smul.addr %s132, 128
          %s134 = scalar_lea.hbm %s0, %s133
          %s135 = sshll.u32 %s127, 4
          %s136 = int_to_ptr.vmem [resolvable:$true] %s135
          %141 = dma.hbm_to_vmem [thread:$0]  %s134, 1024, %s136, %s124, 128, 128, 8
        $region24: #{tpu_custom_call.1} parent=19 // pred_fallthru
          _
      $region20: #{tpu_custom_call.1} parent=5 // pred_fallthru
        _
      %p142 = scmp.le.s32.totalorder 1, %s15
      %p143 = scmp.lt.s32.totalorder %s15, 3
      %p144 = pnand %p142, %p143
      %p145 = pneg %p144
      // Predicated region
      $region25: #{tpu_custom_call.1} parent=5 // pred_check
        _
      $region26: #{tpu_custom_call.1} parent=5 // pred_check_branch
        %147 = sbr.rel (%p144) target = $region28
      $region27: #{tpu_custom_call.1} parent=5 // pred_region
        %s148 = ssub.s32 %s15, 1
        %s149 = sand.u32 %s28, 1
        %s150 = scalar_lea.sflag [#allocation3], %s149
        %s151 = sand.u32 %s28, 1
        %s152 = smul.addr %s151, 64
        %s153 = scalar_lea.vmem [#allocation2], %s152
        // Predicated region
        $region29: #{tpu_custom_call.1} parent=27 // pred_check
          %p154 = pneg %p41
        $region30: #{tpu_custom_call.1} parent=27 // pred_check_branch
          %156 = sbr.rel (%p154) target = $region32
        $region31: #{tpu_custom_call.1} parent=27 // pred_region
          %157 = dma.done %s150, 1024
        $region32: #{tpu_custom_call.1} parent=27 // pred_fallthru
          _
        // Predicated region
        $region33: #{tpu_custom_call.1} parent=27 // pred_check
          %p158 = pneg %p62
        $region34: #{tpu_custom_call.1} parent=27 // pred_check_branch
          %160 = sbr.rel (%p158) target = $region36
        $region35: #{tpu_custom_call.1} parent=27 // pred_region
          %161 = dma.done [#allocation6], 384
        $region36: #{tpu_custom_call.1} parent=27 // pred_fallthru
          _
        %s162 = sand.u32 %s28, 1
        %s163 = scalar_lea.sflag [#allocation3], %s162
        %s164 = sand.u32 %s28, 1
        %s165 = smul.addr %s164, 64
        %s166 = scalar_lea.vmem [#allocation2], %s165
        %p167 = pneg %p41
        %p168 = pneg %p38
        %p169 = pneg %p62
        %p170 = pneg %p59
        %p171 = pneg %p88
        %p172 = pneg %p85
        %s173 = sand.u32 %s75, 1
        %s174 = scalar_lea.sflag [#allocation4], %s173
        %s175 = sand.u32 %s75, 1
        %s176 = smul.addr %s175, 16
        %s177 = scalar_lea.vmem [#allocation7], %s176
        %s178 = smul.u32 2, %s20
        %s179 = smul.u32 2, %s20
        %v180 = vld [vmem:[#allocation5] sm:$0xff]
        %s181 = scalar_lea.vmem [#allocation5], 8
        %v182 = vld [vmem:[%s181] sm:$0xff]
        %s183 = scalar_lea.vmem [#allocation5], 16
        %v184 = vld [vmem:[%s183] sm:$0xff]
        %v185 = vlaneseq
        %v186 = vand.u32 %v185, 127
        %vm187 = vcmp.ge.s32.totalorder %v186, 16
        %vm188 = vcmp.lt.s32.totalorder %v186, 112
        %vm189 = vcmp.lt.s32.totalorder %v186, 0
        %v190 = vsub.s32 0, %v186
        %v191 = vsel %vm189, %v190, %v186
        %v192 = vshrl.u32 %v191, 4
        %v193 = vand.u32 %v191, 15
        %v194 = vsub.s32 0, %v193
        %v195 = vsel %vm189, %v194, %v193
        %vm196 = vcmp.ne.s32.totalorder %v195, 0
        %vm197 = vcmp.lt.s32.totalorder %v195, 0
        %vm198 = vmand %vm197, %vm196
        %v199 = vadd.s32 %v195, 16
        %v200 = vsel %vm198, %v199, %v195
        %v201 = vld [vmem:[%s153] sm:$0xff]
        %v202 = vld [vmem:[%s153 + $0x8] sm:$0xff]
        %v203 = vld [vmem:[%s153 + $0x10] sm:$0xff]
        %v204 = vld [vmem:[%s153 + $0x18] sm:$0xff]
        %v205 = vadd.f32 %v201, %v203
        %v206 = vadd.f32 %v202, %v204
        %vm207 = vcmask 130048
        %v209 = vsel %vm207, %v180, 0
        %211 = vmatprep.subr.mxu0 0.0
        %212 = vmatpush1.msra.mxu0 %v205
        %213 = vmatprep.subr.mxu0 0.0
        %214 = vmatpush1.msra.mxu0 %v206
        %215 = vmatprep.subr.mxu0 0.0
        %216 = vmatpush1.msra.mxu0 0.0
        %217 = vmatprep.subr.mxu0 0.0
        %218 = vmatpush1.msra.mxu0 0.0
        %219 = vmatprep.subr.mxu0 0.0
        %220 = vmatpush1.msra.mxu0 0.0
        %221 = vmatprep.subr.mxu0 0.0
        %222 = vmatpush1.msra.mxu0 0.0
        %223 = vmatprep.subr.mxu0 0.0
        %224 = vmatpush1.msra.mxu0 0.0
        %225 = vmatprep.subr.mxu0 0.0
        %226 = vmatpush1.msra.mxu0 0.0
        %227 = vmatprep.subr.mxu0 0.0
        %228 = vmatpush1.msra.mxu0 0.0
        %229 = vmatprep.subr.mxu0 0.0
        %230 = vmatpush1.msra.mxu0 0.0
        %231 = vmatprep.subr.mxu0 0.0
        %232 = vmatpush1.msra.mxu0 0.0
        %233 = vmatprep.subr.mxu0 0.0
        %234 = vmatpush1.msra.mxu0 0.0
        %235 = vmatprep.subr.mxu0 0.0
        %236 = vmatpush1.msra.mxu0 0.0
        %237 = vmatprep.subr.mxu0 0.0
        %238 = vmatpush1.msra.mxu0 0.0
        %239 = vmatprep.subr.mxu0 0.0
        %240 = vmatpush1.msra.mxu0 0.0
        %241 = vmatprep.subr.mxu0 0.0
        %242 = vmatpush1.msra.mxu0 0.0
        %243 = vmatprep.subr.mxu0 0.0
        %244 = vmatpush1.msra.mxu0 0.0
        %245 = vmatprep.subr.mxu0 0.0
        %246 = vmatpush1.msra.mxu0 0.0
        %247 = vmatprep.subr.mxu0 0.0
        %248 = vmatpush1.msra.mxu0 0.0
        %249 = vmatprep.subr.mxu0 0.0
        %250 = vmatpush1.msra.mxu0 0.0
        %251 = vmatprep.subr.mxu0 0.0
        %252 = vmatpush1.msra.mxu0 0.0
        %253 = vmatprep.subr.mxu0 0.0
        %254 = vmatpush1.msra.mxu0 0.0
        %255 = vmatprep.subr.mxu0 0.0
        %256 = vmatpush1.msra.mxu0 0.0
        %257 = vmatprep.subr.mxu0 0.0
        %258 = vmatpush1.msra.mxu0 0.0
        %259 = vmatprep.subr.mxu0 0.0
        %260 = vmatpush1.msra.mxu0 0.0
        %261 = vmatprep.subr.mxu0 0.0
        %262 = vmatpush1.msra.mxu0 0.0
        %263 = vmatprep.subr.mxu0 0.0
        %264 = vmatpush1.msra.mxu0 0.0
        %265 = vmatprep.subr.mxu0 0.0
        %266 = vmatpush1.msra.mxu0 0.0
        %267 = vmatprep.subr.mxu0 0.0
        %268 = vmatpush1.msra.mxu0 0.0
        %269 = vmatprep.subr.mxu0 0.0
        %270 = vmatpush1.msra.mxu0 0.0
        %271 = vmatprep.subr.mxu0 0.0
        %272 = vmatpush1.msra.mxu0 0.0
        %273 = vmatprep.subr.mxu0 0.0
        %274 = vmatpush1.msra.mxu0 0.0
        %275 = vmatprep.mubr.f32.mxu0 0.0
        %276 = vmatmul.mubr.f32.gmra.mrb[0].mxu0 %v209
        %v277 = vpop.f32.mrb[0].mxu0
        %v278 = vadd.f32 0.0, %v277
        %v279 = vpop.f32.mrb[0].mxu0
        %280 = vdwg.mxu0
        %v282 = vsel %vm207, %v184, 0
        %284 = vmatprep.subr.mxu0 0.0
        %285 = vmatpush1.msra.mxu0 %v205
        %286 = vmatprep.subr.mxu0 0.0
        %287 = vmatpush1.msra.mxu0 %v206
        %288 = vmatprep.subr.mxu0 0.0
        %289 = vmatpush1.msra.mxu0 0.0
        %290 = vmatprep.subr.mxu0 0.0
        %291 = vmatpush1.msra.mxu0 0.0
        %292 = vmatprep.subr.mxu0 0.0
        %293 = vmatpush1.msra.mxu0 0.0
        %294 = vmatprep.subr.mxu0 0.0
        %295 = vmatpush1.msra.mxu0 0.0
        %296 = vmatprep.subr.mxu0 0.0
        %297 = vmatpush1.msra.mxu0 0.0
        %298 = vmatprep.subr.mxu0 0.0
        %299 = vmatpush1.msra.mxu0 0.0
        %300 = vmatprep.subr.mxu0 0.0
        %301 = vmatpush1.msra.mxu0 0.0
        %302 = vmatprep.subr.mxu0 0.0
        %303 = vmatpush1.msra.mxu0 0.0
        %304 = vmatprep.subr.mxu0 0.0
        %305 = vmatpush1.msra.mxu0 0.0
        %306 = vmatprep.subr.mxu0 0.0
        %307 = vmatpush1.msra.mxu0 0.0
        %308 = vmatprep.subr.mxu0 0.0
        %309 = vmatpush1.msra.mxu0 0.0
        %310 = vmatprep.subr.mxu0 0.0
        %311 = vmatpush1.msra.mxu0 0.0
        %312 = vmatprep.subr.mxu0 0.0
        %313 = vmatpush1.msra.mxu0 0.0
        %314 = vmatprep.subr.mxu0 0.0
        %315 = vmatpush1.msra.mxu0 0.0
        %316 = vmatprep.subr.mxu0 0.0
        %317 = vmatpush1.msra.mxu0 0.0
        %318 = vmatprep.subr.mxu0 0.0
        %319 = vmatpush1.msra.mxu0 0.0
        %320 = vmatprep.subr.mxu0 0.0
        %321 = vmatpush1.msra.mxu0 0.0
        %322 = vmatprep.subr.mxu0 0.0
        %323 = vmatpush1.msra.mxu0 0.0
        %324 = vmatprep.subr.mxu0 0.0
        %325 = vmatpush1.msra.mxu0 0.0
        %326 = vmatprep.subr.mxu0 0.0
        %327 = vmatpush1.msra.mxu0 0.0
        %328 = vmatprep.subr.mxu0 0.0
        %329 = vmatpush1.msra.mxu0 0.0
        %330 = vmatprep.subr.mxu0 0.0
        %331 = vmatpush1.msra.mxu0 0.0
        %332 = vmatprep.subr.mxu0 0.0
        %333 = vmatpush1.msra.mxu0 0.0
        %334 = vmatprep.subr.mxu0 0.0
        %335 = vmatpush1.msra.mxu0 0.0
        %336 = vmatprep.subr.mxu0 0.0
        %337 = vmatpush1.msra.mxu0 0.0
        %338 = vmatprep.subr.mxu0 0.0
        %339 = vmatpush1.msra.mxu0 0.0
        %340 = vmatprep.subr.mxu0 0.0
        %341 = vmatpush1.msra.mxu0 0.0
        %342 = vmatprep.subr.mxu0 0.0
        %343 = vmatpush1.msra.mxu0 0.0
        %344 = vmatprep.subr.mxu0 0.0
        %345 = vmatpush1.msra.mxu0 0.0
        %346 = vmatprep.subr.mxu0 0.0
        %347 = vmatpush1.msra.mxu0 0.0
        %348 = vmatprep.mubr.f32.mxu0 0.0
        %349 = vmatmul.mubr.f32.gmra.mrb[0].mxu0 %v282
        %v350 = vpop.f32.mrb[0].mxu0
        %v351 = vadd.f32 0.0, %v350
        %v352 = vpop.f32.mrb[0].mxu0
        %353 = vdwg.mxu0
        %354 = vrot.lane.b32.xlu0 %v278, 16
        %v355 = vpop.permute.xlu0 %354
        %356 = vrot.lane.b32.xlu0 %v351, 112
        %v357 = vpop.permute.xlu0 %356
        %v358 = vsel %vm187, 1, 0
        %vm359 = vcmp.eq.s32.totalorder %v358, 1
        %v360 = vsel %vm359, %v355, 0.0
        %v362 = vsel %vm207, %v182, 0
        %364 = vmatprep.subr.mxu0 0.0
        %365 = vmatpush1.msra.mxu0 %v205
        %366 = vmatprep.subr.mxu0 0.0
        %367 = vmatpush1.msra.mxu0 %v206
        %368 = vmatprep.subr.mxu0 0.0
        %369 = vmatpush1.msra.mxu0 0.0
        %370 = vmatprep.subr.mxu0 0.0
        %371 = vmatpush1.msra.mxu0 0.0
        %372 = vmatprep.subr.mxu0 0.0
        %373 = vmatpush1.msra.mxu0 0.0
        %374 = vmatprep.subr.mxu0 0.0
        %375 = vmatpush1.msra.mxu0 0.0
        %376 = vmatprep.subr.mxu0 0.0
        %377 = vmatpush1.msra.mxu0 0.0
        %378 = vmatprep.subr.mxu0 0.0
        %379 = vmatpush1.msra.mxu0 0.0
        %380 = vmatprep.subr.mxu0 0.0
        %381 = vmatpush1.msra.mxu0 0.0
        %382 = vmatprep.subr.mxu0 0.0
        %383 = vmatpush1.msra.mxu0 0.0
        %384 = vmatprep.subr.mxu0 0.0
        %385 = vmatpush1.msra.mxu0 0.0
        %386 = vmatprep.subr.mxu0 0.0
        %387 = vmatpush1.msra.mxu0 0.0
        %388 = vmatprep.subr.mxu0 0.0
        %389 = vmatpush1.msra.mxu0 0.0
        %390 = vmatprep.subr.mxu0 0.0
        %391 = vmatpush1.msra.mxu0 0.0
        %392 = vmatprep.subr.mxu0 0.0
        %393 = vmatpush1.msra.mxu0 0.0
        %394 = vmatprep.subr.mxu0 0.0
        %395 = vmatpush1.msra.mxu0 0.0
        %396 = vmatprep.subr.mxu0 0.0
        %397 = vmatpush1.msra.mxu0 0.0
        %398 = vmatprep.subr.mxu0 0.0
        %399 = vmatpush1.msra.mxu0 0.0
        %400 = vmatprep.subr.mxu0 0.0
        %401 = vmatpush1.msra.mxu0 0.0
        %402 = vmatprep.subr.mxu0 0.0
        %403 = vmatpush1.msra.mxu0 0.0
        %404 = vmatprep.subr.mxu0 0.0
        %405 = vmatpush1.msra.mxu0 0.0
        %406 = vmatprep.subr.mxu0 0.0
        %407 = vmatpush1.msra.mxu0 0.0
        %408 = vmatprep.subr.mxu0 0.0
        %409 = vmatpush1.msra.mxu0 0.0
        %410 = vmatprep.subr.mxu0 0.0
        %411 = vmatpush1.msra.mxu0 0.0
        %412 = vmatprep.subr.mxu0 0.0
        %413 = vmatpush1.msra.mxu0 0.0
        %414 = vmatprep.subr.mxu0 0.0
        %415 = vmatpush1.msra.mxu0 0.0
        %416 = vmatprep.subr.mxu0 0.0
        %417 = vmatpush1.msra.mxu0 0.0
        %418 = vmatprep.subr.mxu0 0.0
        %419 = vmatpush1.msra.mxu0 0.0
        %420 = vmatprep.subr.mxu0 0.0
        %421 = vmatpush1.msra.mxu0 0.0
        %422 = vmatprep.subr.mxu0 0.0
        %423 = vmatpush1.msra.mxu0 0.0
        %424 = vmatprep.subr.mxu0 0.0
        %425 = vmatpush1.msra.mxu0 0.0
        %426 = vmatprep.subr.mxu0 0.0
        %427 = vmatpush1.msra.mxu0 0.0
        %428 = vmatprep.mubr.f32.mxu0 0.0
        %429 = vmatmul.mubr.f32.gmra.mrb[0].mxu0 %v362
        %v430 = vpop.f32.mrb[0].mxu0
        %v431 = vadd.f32 %v360, %v430
        %v432 = vpop.f32.mrb[0].mxu0
        %433 = vdwg.mxu0
        %v434 = vsel %vm188, 1, 0
        %vm435 = vcmp.eq.s32.totalorder %v434, 1
        %v436 = vsel %vm435, %v357, 0.0
        %v437 = vadd.f32 %v431, %v436
        %438 = vrot.lane.b32.xlu0 %v437, 1
        %v439 = vpop.permute.xlu0 %438
        %440 = vrot.lane.b32.xlu0 %v439, 112
        %v441 = vpop.permute.xlu0 %440
        %vm442 = vcmp.lt.s32.totalorder %v200, 1
        %v443 = vsel %vm442, 1, 0
        %vm444 = vcmp.eq.s32.totalorder %v443, 1
        %v445 = vsel %vm444, %v441, %v439
        %446 = vst [vmem:[%s177] sm:$0xff] %v445
        %s447 = scalar_lea.vmem %s153, 32 [#allocation2]
        %v448 = vld [vmem:[%s447] sm:$0xff]
        %v449 = vld [vmem:[%s447 + $0x8] sm:$0xff]
        %v450 = vld [vmem:[%s447 + $0x10] sm:$0xff]
        %v451 = vld [vmem:[%s447 + $0x18] sm:$0xff]
        %v452 = vadd.f32 %v448, %v450
        %v453 = vadd.f32 %v449, %v451
        %454 = vmatprep.subr.mxu0 0.0
        %455 = vmatpush1.msra.mxu0 %v452
        %456 = vmatprep.subr.mxu0 0.0
        %457 = vmatpush1.msra.mxu0 %v453
        %458 = vmatprep.subr.mxu0 0.0
        %459 = vmatpush1.msra.mxu0 0.0
        %460 = vmatprep.subr.mxu0 0.0
        %461 = vmatpush1.msra.mxu0 0.0
        %462 = vmatprep.subr.mxu0 0.0
        %463 = vmatpush1.msra.mxu0 0.0
        %464 = vmatprep.subr.mxu0 0.0
        %465 = vmatpush1.msra.mxu0 0.0
        %466 = vmatprep.subr.mxu0 0.0
        %467 = vmatpush1.msra.mxu0 0.0
        %468 = vmatprep.subr.mxu0 0.0
        %469 = vmatpush1.msra.mxu0 0.0
        %470 = vmatprep.subr.mxu0 0.0
        %471 = vmatpush1.msra.mxu0 0.0
        %472 = vmatprep.subr.mxu0 0.0
        %473 = vmatpush1.msra.mxu0 0.0
        %474 = vmatprep.subr.mxu0 0.0
        %475 = vmatpush1.msra.mxu0 0.0
        %476 = vmatprep.subr.mxu0 0.0
        %477 = vmatpush1.msra.mxu0 0.0
        %478 = vmatprep.subr.mxu0 0.0
        %479 = vmatpush1.msra.mxu0 0.0
        %480 = vmatprep.subr.mxu0 0.0
        %481 = vmatpush1.msra.mxu0 0.0
        %482 = vmatprep.subr.mxu0 0.0
        %483 = vmatpush1.msra.mxu0 0.0
        %484 = vmatprep.subr.mxu0 0.0
        %485 = vmatpush1.msra.mxu0 0.0
        %486 = vmatprep.subr.mxu0 0.0
        %487 = vmatpush1.msra.mxu0 0.0
        %488 = vmatprep.subr.mxu0 0.0
        %489 = vmatpush1.msra.mxu0 0.0
        %490 = vmatprep.subr.mxu0 0.0
        %491 = vmatpush1.msra.mxu0 0.0
        %492 = vmatprep.subr.mxu0 0.0
        %493 = vmatpush1.msra.mxu0 0.0
        %494 = vmatprep.subr.mxu0 0.0
        %495 = vmatpush1.msra.mxu0 0.0
        %496 = vmatprep.subr.mxu0 0.0
        %497 = vmatpush1.msra.mxu0 0.0
        %498 = vmatprep.subr.mxu0 0.0
        %499 = vmatpush1.msra.mxu0 0.0
        %500 = vmatprep.subr.mxu0 0.0
        %501 = vmatpush1.msra.mxu0 0.0
        %502 = vmatprep.subr.mxu0 0.0
        %503 = vmatpush1.msra.mxu0 0.0
        %504 = vmatprep.subr.mxu0 0.0
        %505 = vmatpush1.msra.mxu0 0.0
        %506 = vmatprep.subr.mxu0 0.0
        %507 = vmatpush1.msra.mxu0 0.0
        %508 = vmatprep.subr.mxu0 0.0
        %509 = vmatpush1.msra.mxu0 0.0
        %510 = vmatprep.subr.mxu0 0.0
        %511 = vmatpush1.msra.mxu0 0.0
        %512 = vmatprep.subr.mxu0 0.0
        %513 = vmatpush1.msra.mxu0 0.0
        %514 = vmatprep.subr.mxu0 0.0
        %515 = vmatpush1.msra.mxu0 0.0
        %516 = vmatprep.subr.mxu0 0.0
        %517 = vmatpush1.msra.mxu0 0.0
        %518 = vmatprep.mubr.f32.mxu0 0.0
        %519 = vmatmul.mubr.f32.gmra.mrb[0].mxu0 %v209
        %v520 = vpop.f32.mrb[0].mxu0
        %v521 = vadd.f32 0.0, %v520
        %v522 = vpop.f32.mrb[0].mxu0
        %523 = vdwg.mxu0
        %524 = vmatprep.subr.mxu0 0.0
        %525 = vmatpush1.msra.mxu0 %v452
        %526 = vmatprep.subr.mxu0 0.0
        %527 = vmatpush1.msra.mxu0 %v453
        %528 = vmatprep.subr.mxu0 0.0
        %529 = vmatpush1.msra.mxu0 0.0
        %530 = vmatprep.subr.mxu0 0.0
        %531 = vmatpush1.msra.mxu0 0.0
        %532 = vmatprep.subr.mxu0 0.0
        %533 = vmatpush1.msra.mxu0 0.0
        %534 = vmatprep.subr.mxu0 0.0
        %535 = vmatpush1.msra.mxu0 0.0
        %536 = vmatprep.subr.mxu0 0.0
        %537 = vmatpush1.msra.mxu0 0.0
        %538 = vmatprep.subr.mxu0 0.0
        %539 = vmatpush1.msra.mxu0 0.0
        %540 = vmatprep.subr.mxu0 0.0
        %541 = vmatpush1.msra.mxu0 0.0
        %542 = vmatprep.subr.mxu0 0.0
        %543 = vmatpush1.msra.mxu0 0.0
        %544 = vmatprep.subr.mxu0 0.0
        %545 = vmatpush1.msra.mxu0 0.0
        %546 = vmatprep.subr.mxu0 0.0
        %547 = vmatpush1.msra.mxu0 0.0
        %548 = vmatprep.subr.mxu0 0.0
        %549 = vmatpush1.msra.mxu0 0.0
        %550 = vmatprep.subr.mxu0 0.0
        %551 = vmatpush1.msra.mxu0 0.0
        %552 = vmatprep.subr.mxu0 0.0
        %553 = vmatpush1.msra.mxu0 0.0
        %554 = vmatprep.subr.mxu0 0.0
        %555 = vmatpush1.msra.mxu0 0.0
        %556 = vmatprep.subr.mxu0 0.0
        %557 = vmatpush1.msra.mxu0 0.0
        %558 = vmatprep.subr.mxu0 0.0
        %559 = vmatpush1.msra.mxu0 0.0
        %560 = vmatprep.subr.mxu0 0.0
        %561 = vmatpush1.msra.mxu0 0.0
        %562 = vmatprep.subr.mxu0 0.0
        %563 = vmatpush1.msra.mxu0 0.0
        %564 = vmatprep.subr.mxu0 0.0
        %565 = vmatpush1.msra.mxu0 0.0
        %566 = vmatprep.subr.mxu0 0.0
        %567 = vmatpush1.msra.mxu0 0.0
        %568 = vmatprep.subr.mxu0 0.0
        %569 = vmatpush1.msra.mxu0 0.0
        %570 = vmatprep.subr.mxu0 0.0
        %571 = vmatpush1.msra.mxu0 0.0
        %572 = vmatprep.subr.mxu0 0.0
        %573 = vmatpush1.msra.mxu0 0.0
        %574 = vmatprep.subr.mxu0 0.0
        %575 = vmatpush1.msra.mxu0 0.0
        %576 = vmatprep.subr.mxu0 0.0
        %577 = vmatpush1.msra.mxu0 0.0
        %578 = vmatprep.subr.mxu0 0.0
        %579 = vmatpush1.msra.mxu0 0.0
        %580 = vmatprep.subr.mxu0 0.0
        %581 = vmatpush1.msra.mxu0 0.0
        %582 = vmatprep.subr.mxu0 0.0
        %583 = vmatpush1.msra.mxu0 0.0
        %584 = vmatprep.subr.mxu0 0.0
        %585 = vmatpush1.msra.mxu0 0.0
        %586 = vmatprep.subr.mxu0 0.0
        %587 = vmatpush1.msra.mxu0 0.0
        %588 = vmatprep.mubr.f32.mxu0 0.0
        %589 = vmatmul.mubr.f32.gmra.mrb[0].mxu0 %v282
        %v590 = vpop.f32.mrb[0].mxu0
        %v591 = vadd.f32 0.0, %v590
        %v592 = vpop.f32.mrb[0].mxu0
        %593 = vdwg.mxu0
        %594 = vrot.lane.b32.xlu0 %v521, 16
        %v595 = vpop.permute.xlu0 %594
        %596 = vrot.lane.b32.xlu0 %v591, 112
        %v597 = vpop.permute.xlu0 %596
        %v598 = vsel %vm359, %v595, 0.0
        %599 = vmatprep.subr.mxu0 0.0
        %600 = vmatpush1.msra.mxu0 %v452
        %601 = vmatprep.subr.mxu0 0.0
        %602 = vmatpush1.msra.mxu0 %v453
        %603 = vmatprep.subr.mxu0 0.0
        %604 = vmatpush1.msra.mxu0 0.0
        %605 = vmatprep.subr.mxu0 0.0
        %606 = vmatpush1.msra.mxu0 0.0
        %607 = vmatprep.subr.mxu0 0.0
        %608 = vmatpush1.msra.mxu0 0.0
        %609 = vmatprep.subr.mxu0 0.0
        %610 = vmatpush1.msra.mxu0 0.0
        %611 = vmatprep.subr.mxu0 0.0
        %612 = vmatpush1.msra.mxu0 0.0
        %613 = vmatprep.subr.mxu0 0.0
        %614 = vmatpush1.msra.mxu0 0.0
        %615 = vmatprep.subr.mxu0 0.0
        %616 = vmatpush1.msra.mxu0 0.0
        %617 = vmatprep.subr.mxu0 0.0
        %618 = vmatpush1.msra.mxu0 0.0
        %619 = vmatprep.subr.mxu0 0.0
        %620 = vmatpush1.msra.mxu0 0.0
        %621 = vmatprep.subr.mxu0 0.0
        %622 = vmatpush1.msra.mxu0 0.0
        %623 = vmatprep.subr.mxu0 0.0
        %624 = vmatpush1.msra.mxu0 0.0
        %625 = vmatprep.subr.mxu0 0.0
        %626 = vmatpush1.msra.mxu0 0.0
        %627 = vmatprep.subr.mxu0 0.0
        %628 = vmatpush1.msra.mxu0 0.0
        %629 = vmatprep.subr.mxu0 0.0
        %630 = vmatpush1.msra.mxu0 0.0
        %631 = vmatprep.subr.mxu0 0.0
        %632 = vmatpush1.msra.mxu0 0.0
        %633 = vmatprep.subr.mxu0 0.0
        %634 = vmatpush1.msra.mxu0 0.0
        %635 = vmatprep.subr.mxu0 0.0
        %636 = vmatpush1.msra.mxu0 0.0
        %637 = vmatprep.subr.mxu0 0.0
        %638 = vmatpush1.msra.mxu0 0.0
        %639 = vmatprep.subr.mxu0 0.0
        %640 = vmatpush1.msra.mxu0 0.0
        %641 = vmatprep.subr.mxu0 0.0
        %642 = vmatpush1.msra.mxu0 0.0
        %643 = vmatprep.subr.mxu0 0.0
        %644 = vmatpush1.msra.mxu0 0.0
        %645 = vmatprep.subr.mxu0 0.0
        %646 = vmatpush1.msra.mxu0 0.0
        %647 = vmatprep.subr.mxu0 0.0
        %648 = vmatpush1.msra.mxu0 0.0
        %649 = vmatprep.subr.mxu0 0.0
        %650 = vmatpush1.msra.mxu0 0.0
        %651 = vmatprep.subr.mxu0 0.0
        %652 = vmatpush1.msra.mxu0 0.0
        %653 = vmatprep.subr.mxu0 0.0
        %654 = vmatpush1.msra.mxu0 0.0
        %655 = vmatprep.subr.mxu0 0.0
        %656 = vmatpush1.msra.mxu0 0.0
        %657 = vmatprep.subr.mxu0 0.0
        %658 = vmatpush1.msra.mxu0 0.0
        %659 = vmatprep.subr.mxu0 0.0
        %660 = vmatpush1.msra.mxu0 0.0
        %661 = vmatprep.subr.mxu0 0.0
        %662 = vmatpush1.msra.mxu0 0.0
        %663 = vmatprep.mubr.f32.mxu0 0.0
        %664 = vmatmul.mubr.f32.gmra.mrb[0].mxu0 %v362
        %v665 = vpop.f32.mrb[0].mxu0
        %v666 = vadd.f32 %v598, %v665
        %v667 = vpop.f32.mrb[0].mxu0
        %668 = vdwg.mxu0
        %v669 = vsel %vm435, %v597, 0.0
        %v670 = vadd.f32 %v666, %v669
        %671 = vrot.lane.b32.xlu0 %v670, 1
        %v672 = vpop.permute.xlu0 %671
        %673 = vrot.lane.b32.xlu0 %v672, 112
        %v674 = vpop.permute.xlu0 %673
        %v675 = vsel %vm444, %v674, %v672
        %s676 = scalar_lea.vmem %s177, 8 [#allocation7]
        %677 = vst [vmem:[%s676] sm:$0xff] %v675
        %s678 = sand.u32 %s75, 1
        %s679 = scalar_lea.sflag [#allocation4], %s678
        %s680 = sand.u32 %s75, 1
        %s681 = smul.addr %s680, 16
        %s682 = scalar_lea.vmem [#allocation7], %s681
        // Predicated region
        $region37: #{tpu_custom_call.1} parent=27 // pred_check
          %p683 = pneg %p85
        $region38: #{tpu_custom_call.1} parent=27 // pred_check_branch
          %685 = sbr.rel (%p683) target = $region40
        $region39: #{tpu_custom_call.1} parent=27 // pred_region
          %s686 = smul.u32 2, %s20
          %s688 = ssub.s32 256, 256
          %689 = vsyncadd %s679, %s688
          %s690 = smul.addr %s686, 128
          %s691 = scalar_lea.hbm %s2, %s690
          %s692 = sshll.u32 %s682, 4
          %s693 = int_to_ptr.vmem [resolvable:$true] %s692
          %698 = dma.vmem_to_hbm [thread:$0]  %s693, 256, %s691, %s679, 128, 128, 8
        $region40: #{tpu_custom_call.1} parent=27 // pred_fallthru
          _
      $region28: #{tpu_custom_call.1} parent=5 // pred_fallthru
        _
      %p699 = scmp.le.s32.totalorder 2, %s15
      // Predicated region
      $region41: #{tpu_custom_call.1} parent=5 // pred_check
        %p700 = pneg %p699
      $region42: #{tpu_custom_call.1} parent=5 // pred_check_branch
        %702 = sbr.rel (%p700) target = $region44
      $region43: #{tpu_custom_call.1} parent=5 // pred_region
        %s703 = ssub.s32 %s15, 2
        // Predicated region
        $region45: #{tpu_custom_call.1} parent=43 // pred_check
          %p704 = pneg %p91
        $region46: #{tpu_custom_call.1} parent=43 // pred_check_branch
          %706 = sbr.rel (%p704) target = $region48
        $region47: #{tpu_custom_call.1} parent=43 // pred_region
          %s707 = sand.u32 %s76, 1
          %s708 = scalar_lea.sflag [#allocation4], %s707
          %s709 = sand.u32 %s76, 1
          %s710 = smul.addr %s709, 16
          %s711 = scalar_lea.vmem [#allocation7], %s710
          %712 = dma.done %s708, 256
        $region48: #{tpu_custom_call.1} parent=43 // pred_fallthru
          _
      $region44: #{tpu_custom_call.1} parent=5 // pred_fallthru
        _
    $region6: #{tpu_custom_call.1} parent=1 // loop_footer
      %s19 = sadd.s32 1, %s15
    $region7: #{tpu_custom_call.1} parent=1 // loop_footer_branch
      %14 = sbr.rel target = $region3
    $region8: #{tpu_custom_call.1} parent=1 // loop_exit
      _
    %713 = vsyncpa [#allocation3], 1
    %s714 = scalar_lea.sflag [#allocation3], 1
    %715 = vsyncpa %s714, 1
    %716 = vsyncpa [#allocation6], 1
    %717 = vsyncpa [#allocation4], 1
    %s718 = scalar_lea.sflag [#allocation4], 1
    %719 = vsyncpa %s718, 1

</llo_original>
